<compile_context>
chip_gen: v7x
topology: tpu7x:2x2x1
jax: 0.10.0
libtpu: 0.0.40
codegen_flags: <defaults>
</compile_context>

<pallas_src>
import jax
import jax.numpy as jnp
from jax.experimental import pallas as pl
from jax.experimental.pallas import tpu as pltpu

_LANES = 128      # vreg lane count
_SUBLANES = 8     # vreg sublane count


def _round_up(x, m):
    return ((x + m - 1) // m) * m


# ----------------------------------------------------------------------------
# Pallas kernel: tiled, lane-dense masked smooth-L1 reduction
# ----------------------------------------------------------------------------
def _make_smooth_l1_kernel(sign, box_dim):
    """sign, box_dim are compile-time Python constants (baked via closure)."""
    sign = float(sign)
    box_dim = float(box_dim)

    def kernel(pred_ref, gt_ref, w_ref, out_ref, acc_ref):
        # pred_ref, gt_ref, w_ref : (TILE_ROWS, 128) blocks in VMEM (native dtype)
        # out_ref                 : (1, 1) f32 in SMEM (scalar loss)
        # acc_ref                 : (2,)  f32 SMEM scratch: [masked sum, weight sum]
        step = pl.program_id(0)

        @pl.when(step == 0)
        def _():
            acc_ref[0] = jnp.float32(0.0)
            acc_ref[1] = jnp.float32(0.0)

        diff = pred_ref[...].astype(jnp.float32) - gt_ref[...].astype(jnp.float32)
        absd = jnp.abs(diff)
        w = w_ref[...].astype(jnp.float32)
        # smooth-L1 (beta = 1.0), masked per element
        per_elem = jnp.where(absd < 1.0, 0.5 * diff * diff, absd - 0.5) * w

        acc_ref[0] = acc_ref[0] + jnp.sum(per_elem)
        acc_ref[1] = acc_ref[1] + jnp.sum(w)

        @pl.when(step == pl.num_programs(0) - 1)
        def _():
            # mean over valid boxes: total / max(n_valid, 1),
            # where n_valid = sum(w) / box_dim  (each valid box has box_dim
            # weighted elements).  Deliberate choice; see surrogate note above.
            out_ref[0, 0] = (sign * acc_ref[0] * box_dim
                             / jnp.maximum(acc_ref[1], box_dim))

    return kernel


def smooth_l1_loss_pallas(pred, gt, mask, *, targeted, tile_rows=512):
    """pred, gt: (N, box_dim); mask: (N,) or (1, N) -> scalar loss (f32)."""
    n, d = pred.shape
    mask = jnp.asarray(mask)
    if mask.ndim == 2:          # tolerate a leading batch axis on the mask
        mask = mask[0]

    compute_dtype = pred.dtype  # keep native dtype through the DMA
    w = jnp.broadcast_to(mask.astype(compute_dtype)[:, None], (n, d))

    # --- lane-dense repack: flatten to (padded_rows, 128) slabs ---------------
    flat_len = n * d
    rows = pl.cdiv(flat_len, _LANES)
    tile_rows = max(_round_up(min(tile_rows, _round_up(rows, _SUBLANES)),
                              _SUBLANES), _SUBLANES)
    padded_rows = _round_up(rows, tile_rows)
    padded_len = padded_rows * _LANES
    num_tiles = padded_rows // tile_rows

    def to_slab(x):
        x = x.reshape(-1).astype(compute_dtype)
        x = jnp.pad(x, (0, padded_len - flat_len))   # zero pad => contributes 0
        return x.reshape(padded_rows, _LANES)

    pred_s, gt_s, w_s = to_slab(pred), to_slab(gt), to_slab(w)

    sign = 1.0 if targeted else -1.0                  # untargeted: push preds away
    kernel = _make_smooth_l1_kernel(sign, d)

    bytes_per = jnp.dtype(compute_dtype).itemsize
    cost = pl.CostEstimate(
        flops=5 * padded_len,
        transcendentals=0,
        bytes_accessed=3 * padded_len * bytes_per + 4,
    )

    out = pl.pallas_call(
        kernel,
        out_shape=jax.ShapeDtypeStruct((1, 1), jnp.float32),
        grid_spec=pltpu.PrefetchScalarGridSpec(
            num_scalar_prefetch=0,
            grid=(num_tiles,),
            in_specs=[
                pl.BlockSpec((tile_rows, _LANES), lambda i: (i, 0)),
                pl.BlockSpec((tile_rows, _LANES), lambda i: (i, 0)),
                pl.BlockSpec((tile_rows, _LANES), lambda i: (i, 0)),
            ],
            out_specs=pl.BlockSpec(memory_space=pltpu.SMEM),
            scratch_shapes=[pltpu.SMEM((2,), jnp.float32)],
        ),
        compiler_params=pltpu.CompilerParams(
            dimension_semantics=("arbitrary",)),
        cost_estimate=cost,
    )(pred_s, gt_s, w_s)
    return out[0, 0]


# ----------------------------------------------------------------------------
# targetedLoss surrogate + PALoss dispatcher (plain-JAX glue)
# ----------------------------------------------------------------------------
def targeted_loss(output_dict, gt_boxes, batch_dat, *, targeted):
    pred_boxes = output_dict['reg_preds']          # (N, 7)
    mask = output_dict['object_bbx_mask']          # (N,) or (1, N)
    return smooth_l1_loss_pallas(pred_boxes, gt_boxes, mask, targeted=targeted)


def pa_loss(output_dict, dat, batch_dat, *, targeted=False):
    """Faithful reproduction of PALoss.forward dispatch semantics."""
    if targeted:
        gt = dat['ego']['target_object_bbox'][0]   # (N, 7)
    else:
        gt = dat['ego']['object_bbx_center'][0]    # (N, 7)
    return targeted_loss(output_dict, gt, batch_dat, targeted=targeted)


# ----------------------------------------------------------------------------
# Demo
# ----------------------------------------------------------------------------
if __name__ == "__main__":
    key = jax.random.PRNGKey(0)
    N_BOX, BOX_DIM = 16, 7     # object_bbx_center-style layout: (max_num, 7)
    N_VALID = 5

    k1, k2, k3 = jax.random.split(key, 3)
    reg_preds = jax.random.normal(k1, (N_BOX, BOX_DIM), dtype=jnp.float32)
    obj_center = jax.random.normal(k2, (N_BOX, BOX_DIM), dtype=jnp.float32)
    target_box = jax.random.normal(k3, (N_BOX, BOX_DIM), dtype=jnp.float32)
    valid_mask = (jnp.arange(N_BOX) < N_VALID).astype(jnp.float32)

    output_dict = {
        'reg_preds': reg_preds,
        'object_bbx_mask': valid_mask,
    }
    # dat['ego'][...] carries a leading batch axis; forward indexes [0].
    dat = {
        'ego': {
            'object_bbx_center': obj_center[None, ...],     # (1, N, 7)
            'target_object_bbox': target_box[None, ...],    # (1, N, 7)
        }
    }
    batch_dat = {}

    loss_untargeted = pa_loss(output_dict, dat, batch_dat, targeted=False)
    loss_targeted = pa_loss(output_dict, dat, batch_dat, targeted=True)
    jax.block_until_ready((loss_untargeted, loss_targeted))

    # Pure-JAX reference check.
    def ref(pred, gt, mask, sign):
        diff = pred - gt
        a = jnp.abs(diff)
        sl1 = jnp.where(a < 1.0, 0.5 * diff * diff, a - 0.5) * mask[:, None]
        return sign * jnp.sum(sl1) / jnp.maximum(jnp.sum(mask), 1.0)

    ref_u = ref(reg_preds, obj_center, valid_mask, -1.0)
    ref_t = ref(reg_preds, target_box, valid_mask, 1.0)
    assert jnp.allclose(loss_untargeted, ref_u, atol=1e-5), (loss_untargeted, ref_u)
    assert jnp.allclose(loss_targeted, ref_t, atol=1e-5), (loss_targeted, ref_t)

    print("KERNEL_OK")
</pallas_src>

<mosaic_0001>
module attributes {stable_mosaic.version = 11 : i64} {
  func.func @kernel(%arg0: i32, %arg1: memref<8x128xf32, #tpu.memory_space<vmem>>, %arg2: memref<8x128xf32, #tpu.memory_space<vmem>>, %arg3: memref<8x128xf32, #tpu.memory_space<vmem>>, %arg4: memref<1x1xf32, #tpu.memory_space<smem>>, %arg5: memref<2xf32, #tpu.memory_space<smem>>) attributes {dimension_semantics = [#tpu.dimension_semantics<arbitrary>], iteration_bounds = array<i64: 1>, scalar_prefetch = 0 : i64, scratch_operands = 1 : i64, tpu.core_type = #tpu.core_type<tc>, window_params = [{transform_indices = @transform_0, window_bounds = array<i64: 8, 128>}, {transform_indices = @transform_1, window_bounds = array<i64: 8, 128>}, {transform_indices = @transform_2, window_bounds = array<i64: 8, 128>}, {transform_indices = @transform_3, window_bounds = array<i64: 1, 1>}]} {
    %c0_i32 = arith.constant 0 : i32
    %0 = arith.cmpi eq, %arg0, %c0_i32 : i32
    %1 = arith.extui %0 : i1 to i32
    %c0_i32_0 = arith.constant 0 : i32
    %2 = arith.cmpi ne, %1, %c0_i32_0 : i32
    scf.if %2 {
      %cst_15 = arith.constant 0.000000e+00 : f32
      %c0_16 = arith.constant 0 : index
      %34 = memref.load %arg5[%c0_16] : memref<2xf32, #tpu.memory_space<smem>>
      memref.store %cst_15, %arg5[%c0_16] : memref<2xf32, #tpu.memory_space<smem>>
      %cst_17 = arith.constant 0.000000e+00 : f32
      %c1_18 = arith.constant 1 : index
      %35 = memref.load %arg5[%c1_18] : memref<2xf32, #tpu.memory_space<smem>>
      memref.store %cst_17, %arg5[%c1_18] : memref<2xf32, #tpu.memory_space<smem>>
    } else {
    }
    %c0 = arith.constant 0 : index
    %c0_1 = arith.constant 0 : index
    %3 = vector.load %arg1[%c0, %c0_1] : memref<8x128xf32, #tpu.memory_space<vmem>>, vector<8x128xf32>
    %c0_2 = arith.constant 0 : index
    %c0_3 = arith.constant 0 : index
    %4 = vector.load %arg2[%c0_2, %c0_3] : memref<8x128xf32, #tpu.memory_space<vmem>>, vector<8x128xf32>
    %5 = arith.subf %3, %4 : vector<8x128xf32>
    %6 = math.absf %5 : vector<8x128xf32>
    %c0_4 = arith.constant 0 : index
    %c0_5 = arith.constant 0 : index
    %7 = vector.load %arg3[%c0_4, %c0_5] : memref<8x128xf32, #tpu.memory_space<vmem>>, vector<8x128xf32>
    %cst = arith.constant 1.000000e+00 : f32
    %8 = vector.broadcast %cst : f32 to vector<8x128xf32>
    %9 = arith.cmpf olt, %6, %8 : vector<8x128xf32>
    %cst_6 = arith.constant 5.000000e-01 : f32
    %10 = vector.broadcast %cst_6 : f32 to vector<8x128xf32>
    %11 = arith.mulf %10, %5 : vector<8x128xf32>
    %12 = arith.mulf %11, %5 : vector<8x128xf32>
    %cst_7 = arith.constant 5.000000e-01 : f32
    %13 = vector.broadcast %cst_7 : f32 to vector<8x128xf32>
    %14 = arith.subf %6, %13 : vector<8x128xf32>
    %15 = arith.select %9, %12, %14 : vector<8x128xi1>, vector<8x128xf32>
    %16 = arith.mulf %15, %7 : vector<8x128xf32>
    %c0_8 = arith.constant 0 : index
    %17 = memref.load %arg5[%c0_8] : memref<2xf32, #tpu.memory_space<smem>>
    %18 = vector.shape_cast %16 : vector<8x128xf32> to vector<1x8x128xf32>
    %cst_9 = arith.constant dense<0.000000e+00> : vector<1xf32>
    %19 = vector.multi_reduction <add>, %18, %cst_9 [1, 2] : vector<1x8x128xf32> to vector<1xf32>
    %20 = vector.shape_cast %19 : vector<1xf32> to vector<1x1x1xf32>
    %21 = vector.extract %20[0, 0, 0] : f32 from vector<1x1x1xf32>
    %22 = arith.addf %17, %21 : f32
    %c0_10 = arith.constant 0 : index
    %23 = memref.load %arg5[%c0_10] : memref<2xf32, #tpu.memory_space<smem>>
    memref.store %22, %arg5[%c0_10] : memref<2xf32, #tpu.memory_space<smem>>
    %c1 = arith.constant 1 : index
    %24 = memref.load %arg5[%c1] : memref<2xf32, #tpu.memory_space<smem>>
    %25 = vector.shape_cast %7 : vector<8x128xf32> to vector<1x8x128xf32>
    %cst_11 = arith.constant dense<0.000000e+00> : vector<1xf32>
    %26 = vector.multi_reduction <add>, %25, %cst_11 [1, 2] : vector<1x8x128xf32> to vector<1xf32>
    %27 = vector.shape_cast %26 : vector<1xf32> to vector<1x1x1xf32>
    %28 = vector.extract %27[0, 0, 0] : f32 from vector<1x1x1xf32>
    %29 = arith.addf %24, %28 : f32
    %c1_12 = arith.constant 1 : index
    %30 = memref.load %arg5[%c1_12] : memref<2xf32, #tpu.memory_space<smem>>
    memref.store %29, %arg5[%c1_12] : memref<2xf32, #tpu.memory_space<smem>>
    %c0_i32_13 = arith.constant 0 : i32
    %31 = arith.cmpi eq, %arg0, %c0_i32_13 : i32
    %32 = arith.extui %31 : i1 to i32
    %c0_i32_14 = arith.constant 0 : i32
    %33 = arith.cmpi ne, %32, %c0_i32_14 : i32
    scf.if %33 {
      %c0_15 = arith.constant 0 : index
      %34 = memref.load %arg5[%c0_15] : memref<2xf32, #tpu.memory_space<smem>>
      %cst_16 = arith.constant -1.000000e+00 : f32
      %35 = arith.mulf %cst_16, %34 : f32
      %cst_17 = arith.constant 7.000000e+00 : f32
      %36 = arith.mulf %35, %cst_17 : f32
      %c1_18 = arith.constant 1 : index
      %37 = memref.load %arg5[%c1_18] : memref<2xf32, #tpu.memory_space<smem>>
      %cst_19 = arith.constant 7.000000e+00 : f32
      %38 = arith.maximumf %37, %cst_19 : f32
      %39 = arith.divf %36, %38 : f32
      %c0_20 = arith.constant 0 : index
      %c0_21 = arith.constant 0 : index
      %40 = memref.load %arg4[%c0_20, %c0_21] : memref<1x1xf32, #tpu.memory_space<smem>>
      memref.store %39, %arg4[%c0_20, %c0_21] : memref<1x1xf32, #tpu.memory_space<smem>>
    } else {
    }
    return
  }
  func.func @transform_0(%arg0: i32) -> (i32, i32) {
    %c0_i32 = arith.constant 0 : i32
    %c0_i32_0 = arith.constant 0 : i32
    return %arg0, %c0_i32 : i32, i32
  }
  func.func @transform_1(%arg0: i32) -> (i32, i32) {
    %c0_i32 = arith.constant 0 : i32
    %c0_i32_0 = arith.constant 0 : i32
    return %arg0, %c0_i32 : i32, i32
  }
  func.func @transform_2(%arg0: i32) -> (i32, i32) {
    %c0_i32 = arith.constant 0 : i32
    %c0_i32_0 = arith.constant 0 : i32
    return %arg0, %c0_i32 : i32, i32
  }
  func.func @transform_3(%arg0: i32) -> (i32, i32) {
    %c0_i32 = arith.constant 0 : i32
    %c0_i32_0 = arith.constant 0 : i32
    %c0_i32_1 = arith.constant 0 : i32
    return %c0_i32, %c0_i32_0 : i32, i32
  }
}

</mosaic_0001>

<llo_original>
// kernel: tpu_custom_call.1
$region0: #{tpu_custom_call.1}
  #allocation0 [shape = 'u32[]', space=smem, size = 0x4, offset = 0x4, fixed_abs, tag = 'smem constant byte address 0x4 - core index']
  #allocation1 [shape = 'u32[144,128]{1,0:T(1,128)}', space=vmem, size = 0x12000, scoped, tag = 'internal scratch']
  #allocation2 [shape = 'f32[2]{0:T(128)}', space=smem, size = 0x200, scoped, tag = 'scratch operand']
  %s0 = inlined_call_operand.hbm [shape: f32[8,128], index: 0, kind: input, shape index: {}]
  %s1 = inlined_call_operand.hbm [shape: f32[8,128], index: 1, kind: input, shape index: {}]
  %s2 = inlined_call_operand.hbm [shape: f32[8,128], index: 2, kind: input, shape index: {}]
  %s3 = inlined_call_operand.hbm [shape: f32[1,1], index: 3, kind: output, shape index: {}]
  %s4 = sld [smem:[#allocation0]]
  $region42: #{tpu_custom_call.1} parent=0
    _
  %s6 = ssub.s32 1, %s4
  %s7 = scalar_select 0, %s6, %s4
  $region1: #{tpu_custom_call.1} parent=0
    #allocation3 [shape = 'u8[4096]{0}', space=vmem, size = 0x1000, scoped, tag = 'input window, operand 0, single buffered']
    #allocation4 [shape = 's32[1]{0}', space=sflag, size = 0x4, scoped, tag = 'scoped memory for tpu_custom_call.1']
    #allocation5 [shape = 's32[1]{0}', space=sflag, size = 0x4, scoped, tag = 'scoped memory for tpu_custom_call.1']
    #allocation6 [shape = 'u8[4096]{0}', space=vmem, size = 0x1000, scoped, tag = 'input window, operand 1, single buffered']
    #allocation7 [shape = 's32[1]{0}', space=sflag, size = 0x4, scoped, tag = 'scoped memory for tpu_custom_call.1']
    #allocation8 [shape = 'u8[4096]{0}', space=vmem, size = 0x1000, scoped, tag = 'input window, operand 2, single buffered']
    #allocation9 [shape = 'u8[512]{0}', space=smem, size = 0x200, scoped, tag = 'output window, operand 0, single buffered']
    %8 = vsyncpa [#allocation4], 0
    %9 = vsyncpa [#allocation7], 0
    %10 = vsyncpa [#allocation5], 0
    // Predicated region
    $region2: #{tpu_custom_call.1} parent=1 // pred_check
      _
    $region3: #{tpu_custom_call.1} parent=1 // pred_check_branch
      %12 = sbr.rel (0) target = $region5
    $region4: #{tpu_custom_call.1} parent=1 // pred_region
      %s14 = ssub.s32 128, 128
      %15 = vsyncadd [#allocation4], %s14
      %s17 = sshll.u32 [#allocation3], 4
      %s18 = int_to_ptr.vmem [resolvable:$true] %s17
      %20 = dma.hbm_to_vmem [thread:$0]  %s0, 128, %s18, [#allocation4]
    $region5: #{tpu_custom_call.1} parent=1 // pred_fallthru
      _
    // Predicated region
    $region6: #{tpu_custom_call.1} parent=1 // pred_check
      _
    $region7: #{tpu_custom_call.1} parent=1 // pred_check_branch
      %22 = sbr.rel (0) target = $region9
    $region8: #{tpu_custom_call.1} parent=1 // pred_region
      %s24 = ssub.s32 128, 128
      %25 = vsyncadd [#allocation7], %s24
      %s27 = sshll.u32 [#allocation6], 4
      %s28 = int_to_ptr.vmem [resolvable:$true] %s27
      %30 = dma.hbm_to_vmem [thread:$0]  %s1, 128, %s28, [#allocation7]
    $region9: #{tpu_custom_call.1} parent=1 // pred_fallthru
      _
    // Predicated region
    $region10: #{tpu_custom_call.1} parent=1 // pred_check
      _
    $region11: #{tpu_custom_call.1} parent=1 // pred_check_branch
      %32 = sbr.rel (0) target = $region13
    $region12: #{tpu_custom_call.1} parent=1 // pred_region
      %s34 = ssub.s32 128, 128
      %35 = vsyncadd [#allocation7], %s34
      %s37 = sshll.u32 [#allocation8], 4
      %s38 = int_to_ptr.vmem [resolvable:$true] %s37
      %40 = dma.hbm_to_vmem [thread:$0]  %s2, 128, %s38, [#allocation7]
    $region13: #{tpu_custom_call.1} parent=1 // pred_fallthru
      _
    // Predicated region
    $region14: #{tpu_custom_call.1} parent=1 // pred_check
      _
    $region15: #{tpu_custom_call.1} parent=1 // pred_check_branch
      %42 = sbr.rel (0) target = $region17
    $region16: #{tpu_custom_call.1} parent=1 // pred_region
      %43 = dma.done [#allocation4], 128
    $region17: #{tpu_custom_call.1} parent=1 // pred_fallthru
      _
    // Predicated region
    $region18: #{tpu_custom_call.1} parent=1 // pred_check
      _
    $region19: #{tpu_custom_call.1} parent=1 // pred_check_branch
      %45 = sbr.rel (0) target = $region21
    $region20: #{tpu_custom_call.1} parent=1 // pred_region
      %46 = dma.done [#allocation7], 128
    $region21: #{tpu_custom_call.1} parent=1 // pred_fallthru
      _
    // Predicated region
    $region22: #{tpu_custom_call.1} parent=1 // pred_check
      _
    $region23: #{tpu_custom_call.1} parent=1 // pred_check_branch
      %48 = sbr.rel (0) target = $region25
    $region24: #{tpu_custom_call.1} parent=1 // pred_region
      %49 = dma.done [#allocation7], 128
    $region25: #{tpu_custom_call.1} parent=1 // pred_fallthru
      _
    %p50 = scmp.eq.s32.totalorder 0, 0
    // Predicated region
    $region26: #{tpu_custom_call.1} parent=1 // pred_check
      %p51 = pneg %p50
    $region27: #{tpu_custom_call.1} parent=1 // pred_check_branch
      %53 = sbr.rel (%p51) target = $region29
    $region28: #{tpu_custom_call.1} parent=1 // pred_region
      %s54 = scalar_lea.smem [#allocation2], 0
      %55 = sst [smem:[%s54]] 0.0
      %s56 = scalar_lea.smem [#allocation2], 1
      %57 = sst [smem:[%s56]] 0.0
    $region29: #{tpu_custom_call.1} parent=1 // pred_fallthru
      _
    %v58 = vld [vmem:[#allocation3] sm:$0xff]
    %v59 = vld [vmem:[#allocation6] sm:$0xff]
    %v60 = vsub.f32 %v58, %v59
    %v61 = vand.u32 2147483647, %v60
    %v62 = vld [vmem:[#allocation8] sm:$0xff]
    %vm63 = vcmp.lt.f32.partialorder %v61, 1.0
    %v64 = vmul.f32 %v60, 0.5
    %v65 = vmul.f32 %v64, %v60
    %v66 = vsub.f32 %v61, 0.5
    %v67 = vsel %vm63, %v65, %v66
    %v68 = vmul.f32 %v67, %v62
    %s69 = sld [smem:[#allocation2]]
    %70 = vadd.xlane.f32.xlu0 %v68
    %v71 = vpop.xlane.xlu0 %70
    %v72 = vrot.slane %v71, 4
    %v73 = vadd.f32 %v71, %v72
    %v74 = vrot.slane %v73, 2
    %v75 = vadd.f32 %v73, %v74
    %v76 = vrot.slane %v75, 1
    %v77 = vadd.f32 %v75, %v76
    %s78 = vtos %v77
    %s79 = sadd.f32 %s69, %s78
    %s80 = scalar_lea.smem [#allocation2], 0
    %81 = sst [smem:[%s80]] %s79
    %s82 = sld [smem:[#allocation2 + $0x1]]
    %83 = vadd.xlane.f32.xlu0 %v62
    %v84 = vpop.xlane.xlu0 %83
    %v85 = vrot.slane %v84, 4
    %v86 = vadd.f32 %v84, %v85
    %v87 = vrot.slane %v86, 2
    %v88 = vadd.f32 %v86, %v87
    %v89 = vrot.slane %v88, 1
    %v90 = vadd.f32 %v88, %v89
    %s91 = vtos %v90
    %s92 = sadd.f32 %s82, %s91
    %s93 = scalar_lea.smem [#allocation2], 1
    %94 = sst [smem:[%s93]] %s92
    // Predicated region
    $region30: #{tpu_custom_call.1} parent=1 // pred_check
      %p95 = pneg %p50
    $region31: #{tpu_custom_call.1} parent=1 // pred_check_branch
      %97 = sbr.rel (%p95) target = $region33
    $region32: #{tpu_custom_call.1} parent=1 // pred_region
      %s98 = sld [smem:[#allocation2]]
      %s99 = smul.f32 %s98, -1.0
      %s100 = smul.f32 %s99, 7.0
      %s101 = sld [smem:[#allocation2 + $0x1]]
      %s102 = smax.f32 %s101, 7.0
      %v103 = vstv %s102
      %v104 = vrcp.pop %v103
      %s105 = vtos %v104
      %s106 = smul.f32 %s100, %s105
      %s107 = scalar_lea.smem [#allocation9], 0
      %108 = sst [smem:[%s107]] %s106
    $region33: #{tpu_custom_call.1} parent=1 // pred_fallthru
      _
    // Predicated region
    $region34: #{tpu_custom_call.1} parent=1 // pred_check
      _
    $region35: #{tpu_custom_call.1} parent=1 // pred_check_branch
      %110 = sbr.rel (0) target = $region37
    $region36: #{tpu_custom_call.1} parent=1 // pred_region
      %s112 = ssub.s32 16, 16
      %113 = vsyncadd [#allocation5], %s112
      %116 = dma.smem_to_hbm [#allocation9], 16, %s3, [#allocation5]
    $region37: #{tpu_custom_call.1} parent=1 // pred_fallthru
      _
    // Predicated region
    $region38: #{tpu_custom_call.1} parent=1 // pred_check
      _
    $region39: #{tpu_custom_call.1} parent=1 // pred_check_branch
      %118 = sbr.rel (0) target = $region41
    $region40: #{tpu_custom_call.1} parent=1 // pred_region
      %119 = dma.done [#allocation5], 16
    $region41: #{tpu_custom_call.1} parent=1 // pred_fallthru
      _
    %120 = sfence
    %121 = vsyncpa [#allocation4], 1
    %122 = vsyncpa [#allocation7], 1
    %123 = vsyncpa [#allocation5], 1

</llo_original>
